<compile_context>
chip_gen: v5e
topology: v5e:2x2
jax: 0.10.0
libtpu: 0.0.40
codegen_flags: <defaults>
</compile_context>

<pallas_src>
from functools import partial

import jax
import jax.numpy as jnp
from jax import lax
from jax.experimental import pallas as pl
from jax.experimental.pallas import tpu as pltpu

KR = 3          # kernel size
DR = (1, 3)     # dilations of the two blocks


def _round_up(x, m):
    return (x + m - 1) // m * m


def _cdiv(a, b):
    return (a + b - 1) // b


def _auto_config():
    """Generation-aware (L-tile rows, vmem_limit_bytes)."""
    vmem_cap = 128 * 1024 * 1024
    try:
        vmem_cap = int(pltpu.get_tpu_info().vmem_capacity_bytes)
    except Exception:
        pass
    if vmem_cap >= 96 * 1024 * 1024:          # v5e / v6e class (128 MiB VMEM)
        return 512, 64 * 1024 * 1024
    # v7x class (64 MiB per TensorCore) or smaller: leave headroom.
    return 256, min(48 * 1024 * 1024, (3 * vmem_cap) // 4)


def weight_norm_weight(v, g):
    # v: (Cout, Cin, K), g: (Cout,)  ->  w = g * v / ||v||_(Cin,K)
    norm = jnp.sqrt(jnp.sum(v * v, axis=(1, 2), keepdims=True))
    return v * (g[:, None, None] / norm)


def resblock_kernel(x_hbm, w1_ref, b1_ref, w2_ref, b2_ref, o_ref,
                    xbuf, sem, *, kr, d1, d2, lt, w0r, l_true, cdtype):
    """One (batch, L-tile) step of the fused two-block residual conv.

    x_hbm : (N, pad_len, Cp)  zero-padded input, raw HBM ref (manual DMA)
    w*_ref: (kr, Cp, Cp)      per-tap weight-normed conv weights (compute dtype)
    b*_ref: (1, Cp)           biases (f32)
    o_ref : (lt, Cp)          output tile
    xbuf  : (2, w0r, Cp)      double-buffered halo'd input window (f32)
    sem   : DMA semaphores (2,)
    """
    n = pl.program_id(0)
    t = pl.program_id(1)
    n_tiles = pl.num_programs(1)
    cp = o_ref.shape[-1]

    h1p = (kr - 1) * d1 // 2                 # pad / halo of conv 1
    h2p = (kr - 1) * d2 // 2                 # pad / halo of conv 2
    align = 128 if lt % 128 == 0 else 8

    def window_copy(tile, slot):
        start = pl.multiple_of(tile * lt, align)
        return pltpu.make_async_copy(
            x_hbm.at[n, pl.ds(start, w0r), :], xbuf.at[slot], sem.at[slot])

    slot = lax.rem(t, 2)

    # First tile of each batch row primes its own window (no cross-row state:
    # the batch axis is "parallel" and may be split across TensorCores).
    @pl.when(t == 0)
    def _():
        window_copy(t, slot).start()

    # Prefetch the next window of this batch row while computing the current.
    @pl.when(t + 1 < n_tiles)
    def _():
        window_copy(t + 1, 1 - slot).start()

    # Wait for the current window.
    window_copy(t, slot).wait()

    x0 = xbuf[slot]                          # (w0r, cp) f32

    def lrelu(v):
        return jnp.where(v >= 0, v, 0.1 * v)

    def shift_rows(v, r):
        # Row i of the result is row (i + r) of v (r >= 0, static).  Wrapped
        # rows land past every row that is subsequently read.
        if r == 0:
            return v
        return pltpu.roll(v, shift=(v.shape[0] - r) % v.shape[0], axis=0)

    # ---- block 1: x1 = x + conv_d1(leaky_relu(x)) + b1 (extended region) ----
    h0 = lrelu(x0)                           # f32
    y1 = jnp.zeros((w0r, cp), jnp.float32)
    for k in range(kr):
        hk = shift_rows(h0, k * d1).astype(cdtype)
        y1 = y1 + jnp.dot(hk, w1_ref[k], preferred_element_type=jnp.float32)
    x1 = shift_rows(x0, h1p) + y1 + b1_ref[...]

    # ---- block 2: out = x1 + conv_d2(leaky_relu(x1)) + b2 (output tile) ----
    # conv2's zero padding: leaky_relu(x1) must be zero outside the true
    # sequence range [0, L); mask by global position.  (Cheap vs. the dots;
    # kept unconditional for all tiles.)
    gpos = t * lt - h2p + lax.broadcasted_iota(jnp.int32, (w0r, 1), 0)
    valid = (gpos >= 0) & (gpos < l_true)
    h1 = jnp.where(valid, lrelu(x1), 0.0)    # f32
    y2 = jnp.zeros((w0r, cp), jnp.float32)
    for k in range(kr):
        hk = shift_rows(h1, k * d2).astype(cdtype)
        y2 = y2 + jnp.dot(hk, w2_ref[k], preferred_element_type=jnp.float32)
    out = shift_rows(x1, h2p) + y2 + b2_ref[...]

    o_ref[...] = out[:lt].astype(o_ref.dtype)   # single lane-dense tile store


def resblock(x_nlc, params, *, kr=KR, dr=DR, l_tile=None,
             compute_dtype=jnp.bfloat16):
    """x_nlc: (N, L, C) float32 (channels-last; PyTorch layout is (N, C, L)).
    params: [(v, g, b)] * 2 with PyTorch shapes v:(C,C,kr), g:(C,), b:(C,)."""
    assert kr % 2 == 1, "'same' padding formula (kr-1)*d//2 requires odd kr"
    N, L, C = x_nlc.shape
    d1, d2 = dr
    h1 = (kr - 1) * d1 // 2
    h2 = (kr - 1) * d2 // 2
    halo = h1 + h2

    # ---- tile / VMEM selection (generation-aware) ----
    lt_auto, vmem_limit = _auto_config()
    lt = lt_auto if l_tile is None else l_tile
    lt = max(8, _round_up(min(lt, _round_up(L, 8)), 8))
    t_tiles = _cdiv(L, lt)
    # v7x megacore: keep >= 2 grid steps so both TensorCores get work.
    if N * t_tiles < 2 and L > 8:
        half = _cdiv(L, 2)
        lt = _round_up(half, 128) if half >= 128 else _round_up(half, 8)
        t_tiles = _cdiv(L, lt)
    l_round = t_tiles * lt

    w0 = lt + 2 * halo                        # halo'd window rows
    w0r = _round_up(w0, 8)                    # sublane-aligned window rows
    cp = _round_up(C, 128)                    # lane-dense channel dim

    # Single zero-pad pass (L halo + rounding + channel padding).  Zeros are
    # exactly the convs' zero padding because LeakyReLU(0) == 0 and the padded
    # weight rows/cols and biases are zero.
    pad_len = l_round + 2 * halo + (w0r - w0)
    x_pad = jnp.pad(
        x_nlc, ((0, 0), (halo, pad_len - halo - L), (0, cp - C)))

    # Per-tap weight slabs (kr, Cin_p, Cout_p) in compute dtype; f32 biases.
    w_slabs, b_rows = [], []
    for (v, g, b) in params:
        w = weight_norm_weight(v, g)                      # (Cout, Cin, K)
        w_t = jnp.transpose(w, (2, 1, 0))                 # (K, Cin, Cout)
        w_t = jnp.pad(w_t, ((0, 0), (0, cp - C), (0, cp - C)))
        w_slabs.append(w_t.astype(compute_dtype))
        b_rows.append(jnp.pad(b, (0, cp - C)).reshape(1, cp)
                      .astype(jnp.float32))

    kernel = partial(resblock_kernel, kr=kr, d1=d1, d2=d2, lt=lt, w0r=w0r,
                     l_true=L, cdtype=compute_dtype)

    out = pl.pallas_call(
        kernel,
        out_shape=jax.ShapeDtypeStruct((N, l_round, cp), x_nlc.dtype),
        grid=(N, t_tiles),
        in_specs=[
            pl.BlockSpec(memory_space=pl.ANY),                     # x (HBM; manual halo DMA)
            pl.BlockSpec((kr, cp, cp), lambda n, t: (0, 0, 0)),    # w1 (VMEM resident)
            pl.BlockSpec((1, cp), lambda n, t: (0, 0)),            # b1
            pl.BlockSpec((kr, cp, cp), lambda n, t: (0, 0, 0)),    # w2
            pl.BlockSpec((1, cp), lambda n, t: (0, 0)),            # b2
        ],
        out_specs=pl.BlockSpec((None, lt, cp), lambda n, t: (n, t, 0)),
        scratch_shapes=[
            pltpu.VMEM((2, w0r, cp), x_nlc.dtype),   # double-buffered window
            pltpu.SemaphoreType.DMA((2,)),
        ],
        compiler_params=pltpu.CompilerParams(
            dimension_semantics=("parallel", "arbitrary"),
            vmem_limit_bytes=int(vmem_limit)),
    )(x_pad, w_slabs[0], b_rows[0], w_slabs[1], b_rows[1])

    return out[:, :L, :C]


def ref_resblock(x_nlc, params, *, kr=KR, dr=DR):
    """Pure-JAX reference matching PyTorch ResBlock.forward (NCL internally)."""
    x = jnp.transpose(x_nlc, (0, 2, 1))                         # -> (N, C, L)
    for (v, g, b), d in zip(params, dr):
        w = weight_norm_weight(v, g)                            # (Cout, Cin, K)
        h = jnp.where(x >= 0, x, 0.1 * x)
        pad = (kr - 1) * d // 2
        y = lax.conv_general_dilated(
            h, w, window_strides=(1,), padding=[(pad, pad)],
            rhs_dilation=(d,), dimension_numbers=("NCH", "OIH", "NCH"),
            precision=lax.Precision.HIGHEST)
        x = x + y + b[None, :, None]
    return jnp.transpose(x, (0, 2, 1))                          # -> (N, L, C)


if __name__ == "__main__":
    N, C, L = 2, 4, 16

    key = jax.random.PRNGKey(0)
    kx, *kp = jax.random.split(key, 7)

    # input (NLC here; corresponds to the PyTorch NCL input of shape (2, 4, 16))
    x = jax.random.normal(kx, (N, L, C), dtype=jnp.float32)

    # deterministic weight-norm parameters for the two Conv1d blocks
    params = []
    for i in range(2):
        v = jax.random.normal(kp[3 * i + 0], (C, C, KR), dtype=jnp.float32) * 0.3
        g = jnp.abs(jax.random.normal(kp[3 * i + 1], (C,), dtype=jnp.float32)) + 0.5
        b = jax.random.normal(kp[3 * i + 2], (C,), dtype=jnp.float32) * 0.1
        params.append((v, g, b))

    ref = jax.block_until_ready(ref_resblock(x, params))

    # Exact-f32 MXU path, forced 2 L-tiles (exercises halo DMA + edge masking).
    out_f32 = jax.block_until_ready(
        resblock(x, params, l_tile=8, compute_dtype=jnp.float32))
    assert out_f32.shape == (N, L, C)
    err = jnp.max(jnp.abs(out_f32 - ref))
    assert jnp.allclose(out_f32, ref, atol=2e-5, rtol=2e-5), \
        f"f32 path: max abs err {err}"

    # Default bf16-operand path (f32 accumulation), multi-tile.
    out_bf16 = jax.block_until_ready(
        resblock(x, params, l_tile=8, compute_dtype=jnp.bfloat16))
    err = jnp.max(jnp.abs(out_bf16 - ref))
    assert jnp.allclose(out_bf16, ref, atol=5e-2, rtol=5e-2), \
        f"bf16 path: max abs err {err}"

    # Auto-tiled path (single tile per batch row on this tiny L).
    out_auto = jax.block_until_ready(resblock(x, params))
    err = jnp.max(jnp.abs(out_auto - ref))
    assert jnp.allclose(out_auto, ref, atol=5e-2, rtol=5e-2), \
        f"auto-tiled path: max abs err {err}"

    print("KERNEL_OK")
</pallas_src>

<mosaic_0001>
module attributes {stable_mosaic.version = 11 : i64} {
  func.func @resblock_kernel(%arg0: i32, %arg1: i32, %arg2: memref<2x24x128xf32, #tpu.memory_space<any>>, %arg3: memref<3x128x128xf32, #tpu.memory_space<vmem>>, %arg4: memref<1x128xf32, #tpu.memory_space<vmem>>, %arg5: memref<3x128x128xf32, #tpu.memory_space<vmem>>, %arg6: memref<1x128xf32, #tpu.memory_space<vmem>>, %arg7: memref<1x8x128xf32, #tpu.memory_space<vmem>>, %arg8: memref<2x16x128xf32, #tpu.memory_space<vmem>>, %arg9: memref<2x!tpu.dma_semaphore, #tpu.memory_space<semaphore_mem>>) attributes {dimension_semantics = [#tpu.dimension_semantics<parallel>, #tpu.dimension_semantics<arbitrary>], iteration_bounds = array<i64: 2, 2>, scalar_prefetch = 0 : i64, scratch_operands = 2 : i64, tpu.core_type = #tpu.core_type<tc>, window_params = [{}, {pipeline_mode = #tpu.pipeline_mode<synchronous>, transform_indices = @transform_1, window_bounds = array<i64: 3, 128, 128>}, {pipeline_mode = #tpu.pipeline_mode<synchronous>, transform_indices = @transform_2, window_bounds = array<i64: 1, 128>}, {pipeline_mode = #tpu.pipeline_mode<synchronous>, transform_indices = @transform_3, window_bounds = array<i64: 3, 128, 128>}, {pipeline_mode = #tpu.pipeline_mode<synchronous>, transform_indices = @transform_4, window_bounds = array<i64: 1, 128>}, {transform_indices = @transform_5, window_bounds = array<i64: 1, 8, 128>}]} {
    %c2_i32 = arith.constant 2 : i32
    %0 = arith.remsi %arg1, %c2_i32 : i32
    %c0_i32 = arith.constant 0 : i32
    %1 = arith.cmpi eq, %arg1, %c0_i32 : i32
    %2 = arith.extui %1 : i1 to i32
    %c0_i32_0 = arith.constant 0 : i32
    %3 = arith.cmpi ne, %2, %c0_i32_0 : i32
    scf.if %3 {
      %c8_i32_46 = arith.constant 8 : i32
      %87 = arith.muli %arg1, %c8_i32_46 : i32
      %88 = tpu.assume_multiple %87, 8 : i32
      %c0_i32_47 = arith.constant 0 : i32
      %89 = tpu.memref_slice %arg2[%arg0, %88, %c0_i32_47] : memref<2x24x128xf32, #tpu.memory_space<any>> -> memref<1x16x128xf32, #tpu.memory_space<any>>
      %90 = tpu.memref_squeeze %89 : memref<1x16x128xf32, #tpu.memory_space<any>> -> memref<16x128xf32, #tpu.memory_space<any>>
      %c0_i32_48 = arith.constant 0 : i32
      %c0_i32_49 = arith.constant 0 : i32
      %91 = tpu.memref_slice %arg8[%0, %c0_i32_48, %c0_i32_49] : memref<2x16x128xf32, #tpu.memory_space<vmem>> -> memref<1x16x128xf32, #tpu.memory_space<vmem>>
      %92 = tpu.memref_squeeze %91 : memref<1x16x128xf32, #tpu.memory_space<vmem>> -> memref<16x128xf32, #tpu.memory_space<vmem>>
      %93 = tpu.memref_slice %arg9[%0] : memref<2x!tpu.dma_semaphore, #tpu.memory_space<semaphore_mem>> -> memref<1x!tpu.dma_semaphore, #tpu.memory_space<semaphore_mem>>
      %94 = tpu.memref_squeeze %93 : memref<1x!tpu.dma_semaphore, #tpu.memory_space<semaphore_mem>> -> memref<!tpu.dma_semaphore, #tpu.memory_space<semaphore_mem>>
      tpu.enqueue_dma source(%90 : memref<16x128xf32, #tpu.memory_space<any>>) target(%92 : memref<16x128xf32, #tpu.memory_space<vmem>>) target_semaphore(%94 : memref<!tpu.dma_semaphore, #tpu.memory_space<semaphore_mem>>)
    } else {
    }
    %c1_i32 = arith.constant 1 : i32
    %4 = arith.addi %arg1, %c1_i32 : i32
    %c2_i32_1 = arith.constant 2 : i32
    %5 = arith.cmpi slt, %4, %c2_i32_1 : i32
    %6 = arith.extui %5 : i1 to i32
    %c0_i32_2 = arith.constant 0 : i32
    %7 = arith.cmpi ne, %6, %c0_i32_2 : i32
    scf.if %7 {
      %c1_i32_46 = arith.constant 1 : i32
      %87 = arith.addi %arg1, %c1_i32_46 : i32
      %c1_i32_47 = arith.constant 1 : i32
      %88 = arith.subi %c1_i32_47, %0 : i32
      %c8_i32_48 = arith.constant 8 : i32
      %89 = arith.muli %87, %c8_i32_48 : i32
      %90 = tpu.assume_multiple %89, 8 : i32
      %c0_i32_49 = arith.constant 0 : i32
      %91 = tpu.memref_slice %arg2[%arg0, %90, %c0_i32_49] : memref<2x24x128xf32, #tpu.memory_space<any>> -> memref<1x16x128xf32, #tpu.memory_space<any>>
      %92 = tpu.memref_squeeze %91 : memref<1x16x128xf32, #tpu.memory_space<any>> -> memref<16x128xf32, #tpu.memory_space<any>>
      %c0_i32_50 = arith.constant 0 : i32
      %c0_i32_51 = arith.constant 0 : i32
      %93 = tpu.memref_slice %arg8[%88, %c0_i32_50, %c0_i32_51] : memref<2x16x128xf32, #tpu.memory_space<vmem>> -> memref<1x16x128xf32, #tpu.memory_space<vmem>>
      %94 = tpu.memref_squeeze %93 : memref<1x16x128xf32, #tpu.memory_space<vmem>> -> memref<16x128xf32, #tpu.memory_space<vmem>>
      %95 = tpu.memref_slice %arg9[%88] : memref<2x!tpu.dma_semaphore, #tpu.memory_space<semaphore_mem>> -> memref<1x!tpu.dma_semaphore, #tpu.memory_space<semaphore_mem>>
      %96 = tpu.memref_squeeze %95 : memref<1x!tpu.dma_semaphore, #tpu.memory_space<semaphore_mem>> -> memref<!tpu.dma_semaphore, #tpu.memory_space<semaphore_mem>>
      tpu.enqueue_dma source(%92 : memref<16x128xf32, #tpu.memory_space<any>>) target(%94 : memref<16x128xf32, #tpu.memory_space<vmem>>) target_semaphore(%96 : memref<!tpu.dma_semaphore, #tpu.memory_space<semaphore_mem>>)
    } else {
    }
    %c8_i32 = arith.constant 8 : i32
    %8 = arith.muli %arg1, %c8_i32 : i32
    %9 = tpu.assume_multiple %8, 8 : i32
    %c0_i32_3 = arith.constant 0 : i32
    %10 = tpu.memref_slice %arg2[%arg0, %9, %c0_i32_3] : memref<2x24x128xf32, #tpu.memory_space<any>> -> memref<1x16x128xf32, #tpu.memory_space<any>>
    %11 = tpu.memref_squeeze %10 : memref<1x16x128xf32, #tpu.memory_space<any>> -> memref<16x128xf32, #tpu.memory_space<any>>
    %c0_i32_4 = arith.constant 0 : i32
    %c0_i32_5 = arith.constant 0 : i32
    %12 = tpu.memref_slice %arg8[%0, %c0_i32_4, %c0_i32_5] : memref<2x16x128xf32, #tpu.memory_space<vmem>> -> memref<1x16x128xf32, #tpu.memory_space<vmem>>
    %13 = tpu.memref_squeeze %12 : memref<1x16x128xf32, #tpu.memory_space<vmem>> -> memref<16x128xf32, #tpu.memory_space<vmem>>
    %14 = tpu.memref_slice %arg9[%0] : memref<2x!tpu.dma_semaphore, #tpu.memory_space<semaphore_mem>> -> memref<1x!tpu.dma_semaphore, #tpu.memory_space<semaphore_mem>>
    %15 = tpu.memref_squeeze %14 : memref<1x!tpu.dma_semaphore, #tpu.memory_space<semaphore_mem>> -> memref<!tpu.dma_semaphore, #tpu.memory_space<semaphore_mem>>
    tpu.wait_dma2 semaphore(%15 : memref<!tpu.dma_semaphore, #tpu.memory_space<semaphore_mem>>) src(%11 : memref<16x128xf32, #tpu.memory_space<any>>) dst(%13 : memref<16x128xf32, #tpu.memory_space<vmem>>)
    %16 = arith.index_cast %0 : i32 to index
    %c0 = arith.constant 0 : index
    %c0_6 = arith.constant 0 : index
    %17 = vector.load %arg8[%16, %c0, %c0_6] : memref<2x16x128xf32, #tpu.memory_space<vmem>>, vector<1x16x128xf32>
    %18 = vector.shape_cast %17 : vector<1x16x128xf32> to vector<16x128xf32>
    %cst = arith.constant 0.000000e+00 : f32
    %19 = vector.broadcast %cst : f32 to vector<16x128xf32>
    %20 = arith.cmpf oge, %18, %19 : vector<16x128xf32>
    %cst_7 = arith.constant 1.000000e-01 : f32
    %21 = vector.broadcast %cst_7 : f32 to vector<16x128xf32>
    %22 = arith.mulf %21, %18 : vector<16x128xf32>
    %23 = arith.select %20, %18, %22 : vector<16x128xi1>, vector<16x128xf32>
    %cst_8 = arith.constant 0.000000e+00 : f32
    %24 = vector.broadcast %cst_8 : f32 to vector<16x128xf32>
    %c0_9 = arith.constant 0 : index
    %c0_10 = arith.constant 0 : index
    %c0_11 = arith.constant 0 : index
    %25 = vector.load %arg3[%c0_9, %c0_10, %c0_11] : memref<3x128x128xf32, #tpu.memory_space<vmem>>, vector<1x128x128xf32>
    %26 = vector.shape_cast %25 : vector<1x128x128xf32> to vector<128x128xf32>
    %cst_12 = arith.constant dense<0.000000e+00> : vector<16x128xf32>
    %27 = tpu.matmul %23, %26, %cst_12 {dimension_numbers = #tpu.dot_dimension_numbers<[1], [0], [0], [1], [0, 0, 1, 1], [], []>} : vector<16x128xf32>, vector<128x128xf32>, vector<16x128xf32> -> vector<16x128xf32>
    %28 = arith.addf %24, %27 : vector<16x128xf32>
    %c15_i32 = arith.constant 15 : i32
    %29 = tpu.dynamic_rotate %23 by %c15_i32 dim 0 : vector<16x128xf32>, i32 -> vector<16x128xf32>
    %c1 = arith.constant 1 : index
    %c0_13 = arith.constant 0 : index
    %c0_14 = arith.constant 0 : index
    %30 = vector.load %arg3[%c1, %c0_13, %c0_14] : memref<3x128x128xf32, #tpu.memory_space<vmem>>, vector<1x128x128xf32>
    %31 = vector.shape_cast %30 : vector<1x128x128xf32> to vector<128x128xf32>
    %cst_15 = arith.constant dense<0.000000e+00> : vector<16x128xf32>
    %32 = tpu.matmul %29, %31, %cst_15 {dimension_numbers = #tpu.dot_dimension_numbers<[1], [0], [0], [1], [0, 0, 1, 1], [], []>} : vector<16x128xf32>, vector<128x128xf32>, vector<16x128xf32> -> vector<16x128xf32>
    %33 = arith.addf %28, %32 : vector<16x128xf32>
    %c14_i32 = arith.constant 14 : i32
    %34 = tpu.dynamic_rotate %23 by %c14_i32 dim 0 : vector<16x128xf32>, i32 -> vector<16x128xf32>
    %c2 = arith.constant 2 : index
    %c0_16 = arith.constant 0 : index
    %c0_17 = arith.constant 0 : index
    %35 = vector.load %arg3[%c2, %c0_16, %c0_17] : memref<3x128x128xf32, #tpu.memory_space<vmem>>, vector<1x128x128xf32>
    %36 = vector.shape_cast %35 : vector<1x128x128xf32> to vector<128x128xf32>
    %cst_18 = arith.constant dense<0.000000e+00> : vector<16x128xf32>
    %37 = tpu.matmul %34, %36, %cst_18 {dimension_numbers = #tpu.dot_dimension_numbers<[1], [0], [0], [1], [0, 0, 1, 1], [], []>} : vector<16x128xf32>, vector<128x128xf32>, vector<16x128xf32> -> vector<16x128xf32>
    %38 = arith.addf %33, %37 : vector<16x128xf32>
    %c15_i32_19 = arith.constant 15 : i32
    %39 = tpu.dynamic_rotate %18 by %c15_i32_19 dim 0 : vector<16x128xf32>, i32 -> vector<16x128xf32>
    %40 = arith.addf %39, %38 : vector<16x128xf32>
    %c0_20 = arith.constant 0 : index
    %c0_21 = arith.constant 0 : index
    %41 = vector.load %arg4[%c0_20, %c0_21] : memref<1x128xf32, #tpu.memory_space<vmem>>, vector<1x128xf32>
    %42 = vector.broadcast %41 : vector<1x128xf32> to vector<16x128xf32>
    %43 = arith.addf %40, %42 : vector<16x128xf32>
    %c8_i32_22 = arith.constant 8 : i32
    %44 = arith.muli %arg1, %c8_i32_22 : i32
    %c3_i32 = arith.constant 3 : i32
    %45 = arith.subi %44, %c3_i32 : i32
    %46 = tpu.iota {dimensions = array<i32: 0>} : vector<16x1xi32>
    %47 = vector.broadcast %45 : i32 to vector<16x1xi32>
    %48 = arith.addi %47, %46 : vector<16x1xi32>
    %c0_i32_23 = arith.constant 0 : i32
    %49 = vector.broadcast %c0_i32_23 : i32 to vector<16x1xi32>
    %50 = arith.cmpi sge, %48, %49 : vector<16x1xi32>
    %c16_i32 = arith.constant 16 : i32
    %51 = vector.broadcast %c16_i32 : i32 to vector<16x1xi32>
    %52 = arith.cmpi slt, %48, %51 : vector<16x1xi32>
    %53 = arith.andi %50, %52 : vector<16x1xi1>
    %cst_24 = arith.constant 0.000000e+00 : f32
    %54 = vector.broadcast %cst_24 : f32 to vector<16x128xf32>
    %55 = arith.cmpf oge, %43, %54 : vector<16x128xf32>
    %cst_25 = arith.constant 1.000000e-01 : f32
    %56 = vector.broadcast %cst_25 : f32 to vector<16x128xf32>
    %57 = arith.mulf %56, %43 : vector<16x128xf32>
    %58 = arith.select %55, %43, %57 : vector<16x128xi1>, vector<16x128xf32>
    %cst_26 = arith.constant 0.000000e+00 : f32
    %59 = vector.shape_cast %53 : vector<16x1xi1> to vector<16x1xi1>
    %60 = vector.broadcast %59 : vector<16x1xi1> to vector<16x128xi1>
    %61 = vector.broadcast %cst_26 : f32 to vector<16x128xf32>
    %62 = arith.select %60, %58, %61 : vector<16x128xi1>, vector<16x128xf32>
    %cst_27 = arith.constant 0.000000e+00 : f32
    %63 = vector.broadcast %cst_27 : f32 to vector<16x128xf32>
    %c0_28 = arith.constant 0 : index
    %c0_29 = arith.constant 0 : index
    %c0_30 = arith.constant 0 : index
    %64 = vector.load %arg5[%c0_28, %c0_29, %c0_30] : memref<3x128x128xf32, #tpu.memory_space<vmem>>, vector<1x128x128xf32>
    %65 = vector.shape_cast %64 : vector<1x128x128xf32> to vector<128x128xf32>
    %cst_31 = arith.constant dense<0.000000e+00> : vector<16x128xf32>
    %66 = tpu.matmul %62, %65, %cst_31 {dimension_numbers = #tpu.dot_dimension_numbers<[1], [0], [0], [1], [0, 0, 1, 1], [], []>} : vector<16x128xf32>, vector<128x128xf32>, vector<16x128xf32> -> vector<16x128xf32>
    %67 = arith.addf %63, %66 : vector<16x128xf32>
    %c13_i32 = arith.constant 13 : i32
    %68 = tpu.dynamic_rotate %62 by %c13_i32 dim 0 : vector<16x128xf32>, i32 -> vector<16x128xf32>
    %c1_32 = arith.constant 1 : index
    %c0_33 = arith.constant 0 : index
    %c0_34 = arith.constant 0 : index
    %69 = vector.load %arg5[%c1_32, %c0_33, %c0_34] : memref<3x128x128xf32, #tpu.memory_space<vmem>>, vector<1x128x128xf32>
    %70 = vector.shape_cast %69 : vector<1x128x128xf32> to vector<128x128xf32>
    %cst_35 = arith.constant dense<0.000000e+00> : vector<16x128xf32>
    %71 = tpu.matmul %68, %70, %cst_35 {dimension_numbers = #tpu.dot_dimension_numbers<[1], [0], [0], [1], [0, 0, 1, 1], [], []>} : vector<16x128xf32>, vector<128x128xf32>, vector<16x128xf32> -> vector<16x128xf32>
    %72 = arith.addf %67, %71 : vector<16x128xf32>
    %c10_i32 = arith.constant 10 : i32
    %73 = tpu.dynamic_rotate %62 by %c10_i32 dim 0 : vector<16x128xf32>, i32 -> vector<16x128xf32>
    %c2_36 = arith.constant 2 : index
    %c0_37 = arith.constant 0 : index
    %c0_38 = arith.constant 0 : index
    %74 = vector.load %arg5[%c2_36, %c0_37, %c0_38] : memref<3x128x128xf32, #tpu.memory_space<vmem>>, vector<1x128x128xf32>
    %75 = vector.shape_cast %74 : vector<1x128x128xf32> to vector<128x128xf32>
    %cst_39 = arith.constant dense<0.000000e+00> : vector<16x128xf32>
    %76 = tpu.matmul %73, %75, %cst_39 {dimension_numbers = #tpu.dot_dimension_numbers<[1], [0], [0], [1], [0, 0, 1, 1], [], []>} : vector<16x128xf32>, vector<128x128xf32>, vector<16x128xf32> -> vector<16x128xf32>
    %77 = arith.addf %72, %76 : vector<16x128xf32>
    %c13_i32_40 = arith.constant 13 : i32
    %78 = tpu.dynamic_rotate %43 by %c13_i32_40 dim 0 : vector<16x128xf32>, i32 -> vector<16x128xf32>
    %79 = arith.addf %78, %77 : vector<16x128xf32>
    %c0_41 = arith.constant 0 : index
    %c0_42 = arith.constant 0 : index
    %80 = vector.load %arg6[%c0_41, %c0_42] : memref<1x128xf32, #tpu.memory_space<vmem>>, vector<1x128xf32>
    %81 = vector.broadcast %80 : vector<1x128xf32> to vector<16x128xf32>
    %82 = arith.addf %79, %81 : vector<16x128xf32>
    %83 = vector.extract_strided_slice %82 {offsets = [0, 0], sizes = [8, 128], strides = [1, 1]} : vector<16x128xf32> to vector<8x128xf32>
    %c0_43 = arith.constant 0 : index
    %c0_44 = arith.constant 0 : index
    %c0_45 = arith.constant 0 : index
    %84 = vector.load %arg7[%c0_43, %c0_44, %c0_45] : memref<1x8x128xf32, #tpu.memory_space<vmem>>, vector<1x8x128xf32>
    %85 = vector.shape_cast %84 : vector<1x8x128xf32> to vector<8x128xf32>
    %86 = vector.shape_cast %83 : vector<8x128xf32> to vector<1x8x128xf32>
    tpu.vector_store %arg7[%c0_43, %c0_44, %c0_45], %86 {strides = array<i32>} : memref<1x8x128xf32, #tpu.memory_space<vmem>>, vector<1x8x128xf32>,
    return
  }
  func.func @transform_1(%arg0: i32, %arg1: i32) -> (i32, i32, i32) {
    %c0_i32 = arith.constant 0 : i32
    %c0_i32_0 = arith.constant 0 : i32
    %c0_i32_1 = arith.constant 0 : i32
    %c0_i32_2 = arith.constant 0 : i32
    return %c0_i32, %c0_i32_0, %c0_i32_1 : i32, i32, i32
  }
  func.func @transform_2(%arg0: i32, %arg1: i32) -> (i32, i32) {
    %c0_i32 = arith.constant 0 : i32
    %c0_i32_0 = arith.constant 0 : i32
    %c0_i32_1 = arith.constant 0 : i32
    return %c0_i32, %c0_i32_0 : i32, i32
  }
  func.func @transform_3(%arg0: i32, %arg1: i32) -> (i32, i32, i32) {
    %c0_i32 = arith.constant 0 : i32
    %c0_i32_0 = arith.constant 0 : i32
    %c0_i32_1 = arith.constant 0 : i32
    %c0_i32_2 = arith.constant 0 : i32
    return %c0_i32, %c0_i32_0, %c0_i32_1 : i32, i32, i32
  }
  func.func @transform_4(%arg0: i32, %arg1: i32) -> (i32, i32) {
    %c0_i32 = arith.constant 0 : i32
    %c0_i32_0 = arith.constant 0 : i32
    %c0_i32_1 = arith.constant 0 : i32
    return %c0_i32, %c0_i32_0 : i32, i32
  }
  func.func @transform_5(%arg0: i32, %arg1: i32) -> (i32, i32, i32) {
    %c0_i32 = arith.constant 0 : i32
    %c0_i32_0 = arith.constant 0 : i32
    return %arg0, %arg1, %c0_i32 : i32, i32, i32
  }
}

</mosaic_0001>

<llo_original>
// kernel: tpu_custom_call.1
$region0: #{tpu_custom_call.1}
  #allocation0 [shape = 'u32[]', space=smem, size = 0x4, offset = 0x4, fixed_abs, tag = 'smem constant byte address 0x4 - core index']
  #allocation1 [shape = 'u32[72,128]{1,0:T(1,128)}', space=vmem, size = 0x9000, scoped, tag = 'internal scratch']
  #allocation2 [shape = 'f32[2,16,128]{2,1,0:T(8,128)}', space=vmem, size = 0x4000, scoped, tag = 'scratch operand']
  #allocation3 [shape = 's32[2]{0}', space=sflag, size = 0x8, scoped, tag = 'scratch operand']
  #allocation10 [shape = 's32[]', space=sflag, size = 0x4, offset = 0, fixed_abs, tag = 'sflag constant byte address 0x0 - dummy sync flag']
  #allocation11 [shape = 's32[]', space=sflag, size = 0x4, offset = 0, fixed_abs, tag = 'sflag constant byte address 0x0 - dummy sync flag']
  #allocation12 [shape = 'u32[]', space=smem, size = 0x4, offset = 0x44, fixed_abs, tag = 'smem constant byte address 0x44 - assertion arg 0']
  #allocation13 [shape = 'u32[]', space=smem, size = 0x4, offset = 0x48, fixed_abs, tag = 'smem constant byte address 0x48 - assertion arg 1']
  #allocation14 [shape = 's32[]', space=sflag, size = 0x4, offset = 0, fixed_abs, tag = 'sflag constant byte address 0x0 - dummy sync flag']
  #allocation15 [shape = 's32[]', space=sflag, size = 0x4, offset = 0, fixed_abs, tag = 'sflag constant byte address 0x0 - dummy sync flag']
  %s0 = inlined_call_operand.hbm [shape: f32[2,24,128], index: 0, kind: input, shape index: {}]
  %s1 = inlined_call_operand.hbm [shape: f32[3,128,128], index: 1, kind: input, shape index: {}]
  %s2 = inlined_call_operand.vmem [shape: f32[1,128], index: 2, kind: input, shape index: {}]
  %s3 = inlined_call_operand.hbm [shape: f32[3,128,128], index: 3, kind: input, shape index: {}]
  %s4 = inlined_call_operand.vmem [shape: f32[1,128], index: 4, kind: input, shape index: {}]
  %s5 = inlined_call_operand.hbm [shape: f32[2,16,128], index: 5, kind: output, shape index: {}]
  %s6 = sld [smem:[#allocation0]]
  $region73: #{tpu_custom_call.1} parent=0
    _
  %s8 = ssub.s32 1, %s6
  %s9 = scalar_select 0, %s8, %s6
  $region1: #{tpu_custom_call.1} parent=0
    #allocation4 [shape = 'u8[196608]{0}', space=vmem, size = 0x30000, scoped, tag = 'input window, operand 1, single buffered']
    #allocation5 [shape = 's32[2]{0}', space=sflag, size = 0x8, scoped, tag = 'scoped memory for tpu_custom_call.1']
    #allocation6 [shape = 's32[2]{0}', space=sflag, size = 0x8, scoped, tag = 'scoped memory for tpu_custom_call.1']
    #allocation7 [shape = 'u8[196608]{0}', space=vmem, size = 0x30000, scoped, tag = 'input window, operand 3, single buffered']
    #allocation8 [shape = 's32[1]{0}', space=sflag, size = 0x4, scoped, tag = 'scoped memory for tpu_custom_call.1']
    #allocation9 [shape = 'u8[8192]{0}', space=vmem, size = 0x2000, scoped, tag = 'output window, operand 0']
    %10 = vsyncpa [#allocation5], 0
    %11 = vsyncpa [#allocation8], 0
    %12 = vsyncpa [#allocation6], 0
    %s13 = scalar_lea.sflag [#allocation6], 1
    %14 = vsyncpa %s13, 0
    loop: start=0, step=1, limit=6
    $region2: #{tpu_custom_call.1} parent=1 // loop_pre_header
      _
    $region3: #{tpu_custom_call.1} parent=1 // loop_header
      %s16 = sphi 0, %s20
      %p17 = scmp.ge.s32.totalorder %s16, 6
      %s23 = sphi 0, %s35
      %s24 = sphi 0, %s31
      %s25 = sphi 0, %s23
      %s26 = sphi 0, %s24
      %s27 = sphi 0, %s25
      %s28 = sphi 0, %s26
      %s36 = sphi 0, %s36
      %s38 = sphi 0, %s36
      %s39 = sphi 0, %s38
      %s53 = sphi 0, %s39
      %s57 = sphi 0, %s57
      %s59 = sphi 0, %s57
      %s60 = sphi 0, %s59
      %s74 = sphi 0, %s60
      %s78 = sphi 0, %s78
      %s80 = sphi 0, %s78
      %s81 = sphi 0, %s80
      %s95 = sphi 0, %s81
      %s99 = sphi 0, %s99
      %s101 = sphi 0, %s99
      %s102 = sphi 0, %s101
      %s116 = sphi 0, %s102
      %s124 = sphi 0, %s126
      %s127 = sphi 0, %s124
      %s128 = sphi 0, %s127
      %s144 = sphi 0, %s128
    $region4: #{tpu_custom_call.1} parent=1 // loop_header_branch
      %19 = sbr.rel (%p17) target = $region8
    $region5: #{tpu_custom_call.1} parent=1 // loop_body
      %s21 = ssub.s32 %s16, 1
      %s22 = ssub.s32 %s16, 2
      %s29 = sadd.s32 1, %s24
      %p30 = scmp.ge.s32.totalorder %s29, 2
      %s31 = scalar_select %p30, 0, %s29
      %s32 = sadd.s32 1, %s23
      %s33 = scalar_select %p30, %s32, %s23
      %p34 = scmp.ge.s32.totalorder %s33, 2
      %s35 = scalar_select %p34, 0, %s33
      %s37 = sadd.s32 %s36, 1
      %p40 = scmp.eq.s32.totalorder %s16, 3
      %p41 = scmp.ne.s32.totalorder %s36, %s38
      %p42 = scmp.eq.s32.totalorder %s16, 0
      %p43 = por %p41, %p42
      %p44 = scmp.ne.s32.totalorder %s36, %s38
      %p45 = scmp.eq.s32.totalorder %s21, 3
      %p46 = por %p44, %p45
      %p47 = scmp.ne.s32.totalorder %s38, %s39
      %p48 = scmp.eq.s32.totalorder %s21, 0
      %p49 = por %p47, %p48
      %p50 = scmp.ne.s32.totalorder %s38, %s39
      %p51 = scmp.eq.s32.totalorder %s22, 3
      %p52 = por %p50, %p51
      %p54 = scmp.ne.s32.totalorder %s39, %s53
      %p55 = scmp.eq.s32.totalorder %s22, 0
      %p56 = por %p54, %p55
      %s58 = sadd.s32 %s57, 1
      %p61 = scmp.eq.s32.totalorder %s16, 3
      %p62 = scmp.ne.s32.totalorder %s57, %s59
      %p63 = scmp.eq.s32.totalorder %s16, 0
      %p64 = por %p62, %p63
      %p65 = scmp.ne.s32.totalorder %s57, %s59
      %p66 = scmp.eq.s32.totalorder %s21, 3
      %p67 = por %p65, %p66
      %p68 = scmp.ne.s32.totalorder %s59, %s60
      %p69 = scmp.eq.s32.totalorder %s21, 0
      %p70 = por %p68, %p69
      %p71 = scmp.ne.s32.totalorder %s59, %s60
      %p72 = scmp.eq.s32.totalorder %s22, 3
      %p73 = por %p71, %p72
      %p75 = scmp.ne.s32.totalorder %s60, %s74
      %p76 = scmp.eq.s32.totalorder %s22, 0
      %p77 = por %p75, %p76
      %s79 = sadd.s32 %s78, 1
      %p82 = scmp.eq.s32.totalorder %s16, 3
      %p83 = scmp.ne.s32.totalorder %s78, %s80
      %p84 = scmp.eq.s32.totalorder %s16, 0
      %p85 = por %p83, %p84
      %p86 = scmp.ne.s32.totalorder %s78, %s80
      %p87 = scmp.eq.s32.totalorder %s21, 3
      %p88 = por %p86, %p87
      %p89 = scmp.ne.s32.totalorder %s80, %s81
      %p90 = scmp.eq.s32.totalorder %s21, 0
      %p91 = por %p89, %p90
      %p92 = scmp.ne.s32.totalorder %s80, %s81
      %p93 = scmp.eq.s32.totalorder %s22, 3
      %p94 = por %p92, %p93
      %p96 = scmp.ne.s32.totalorder %s81, %s95
      %p97 = scmp.eq.s32.totalorder %s22, 0
      %p98 = por %p96, %p97
      %s100 = sadd.s32 %s99, 1
      %p103 = scmp.eq.s32.totalorder %s16, 3
      %p104 = scmp.ne.s32.totalorder %s99, %s101
      %p105 = scmp.eq.s32.totalorder %s16, 0
      %p106 = por %p104, %p105
      %p107 = scmp.ne.s32.totalorder %s99, %s101
      %p108 = scmp.eq.s32.totalorder %s21, 3
      %p109 = por %p107, %p108
      %p110 = scmp.ne.s32.totalorder %s101, %s102
      %p111 = scmp.eq.s32.totalorder %s21, 0
      %p112 = por %p110, %p111
      %p113 = scmp.ne.s32.totalorder %s101, %s102
      %p114 = scmp.eq.s32.totalorder %s22, 3
      %p115 = por %p113, %p114
      %p117 = scmp.ne.s32.totalorder %s102, %s116
      %p118 = scmp.eq.s32.totalorder %s22, 0
      %p119 = por %p117, %p118
      %s120 = ssub.s32 %s23, %s35
      %s121 = ssub.s32 %s24, %s31
      %s122 = sor.u32 %s120, %s121
      %p123 = scmp.eq.s32.totalorder %s122, 0
      %s125 = sadd.s32 %s124, 1
      %s126 = scalar_select %p123, %s124, %s125
      %p129 = pneg %p123
      %p130 = scmp.eq.s32.totalorder %s16, 3
      %p131 = por %p129, %p130
      %p132 = scmp.ne.s32.totalorder %s124, %s127
      %p133 = scmp.eq.s32.totalorder %s16, 0
      %p134 = por %p132, %p133
      %p135 = scmp.ne.s32.totalorder %s124, %s127
      %p136 = scmp.eq.s32.totalorder %s21, 3
      %p137 = por %p135, %p136
      %p138 = scmp.ne.s32.totalorder %s127, %s128
      %p139 = scmp.eq.s32.totalorder %s21, 0
      %p140 = por %p138, %p139
      %p141 = scmp.ne.s32.totalorder %s127, %s128
      %p142 = scmp.eq.s32.totalorder %s22, 3
      %p143 = por %p141, %p142
      %p145 = scmp.ne.s32.totalorder %s128, %s144
      %p146 = scmp.eq.s32.totalorder %s22, 0
      %p147 = por %p145, %p146
      %p148 = scmp.le.s32.totalorder 1, %s16
      %p149 = scmp.lt.s32.totalorder %s16, 5
      %p150 = pnand %p148, %p149
      %p151 = pneg %p150
      // Predicated region
      $region9: #{tpu_custom_call.1} parent=5 // pred_check
        _
      $region10: #{tpu_custom_call.1} parent=5 // pred_check_branch
        %153 = sbr.rel (%p150) target = $region12
      $region11: #{tpu_custom_call.1} parent=5 // pred_region
        %s154 = ssub.s32 %s16, 1
        // Predicated region
        $region13: #{tpu_custom_call.1} parent=11 // pred_check
          %p155 = pneg %p49
        $region14: #{tpu_custom_call.1} parent=11 // pred_check_branch
          %157 = sbr.rel (%p155) target = $region16
        $region15: #{tpu_custom_call.1} parent=11 // pred_region
          %159 = vsyncadd [#allocation5], 0
          %s160 = sshll.u32 %s1, 4
          %s161 = int_to_ptr.hbm [resolvable:$true] %s160
          %s162 = sshll.u32 [#allocation4], 4
          %s163 = int_to_ptr.vmem [resolvable:$true] %s162
          %168 = dma.hbm_to_vmem [thread:$0]  %s161, 6144, %s163, [#allocation5], 128, 128, 8
        $region16: #{tpu_custom_call.1} parent=11 // pred_fallthru
          _
        // Predicated region
        $region17: #{tpu_custom_call.1} parent=11 // pred_check
          %p169 = pneg %p70
        $region18: #{tpu_custom_call.1} parent=11 // pred_check_branch
          %171 = sbr.rel (%p169) target = $region20
        $region19: #{tpu_custom_call.1} parent=11 // pred_region
          _
        $region20: #{tpu_custom_call.1} parent=11 // pred_fallthru
          _
        // Predicated region
        $region21: #{tpu_custom_call.1} parent=11 // pred_check
          %p172 = pneg %p91
        $region22: #{tpu_custom_call.1} parent=11 // pred_check_branch
          %174 = sbr.rel (%p172) target = $region24
        $region23: #{tpu_custom_call.1} parent=11 // pred_region
          %176 = vsyncadd [#allocation8], 0
          %s177 = sshll.u32 %s3, 4
          %s178 = int_to_ptr.hbm [resolvable:$true] %s177
          %s179 = sshll.u32 [#allocation7], 4
          %s180 = int_to_ptr.vmem [resolvable:$true] %s179
          %185 = dma.hbm_to_vmem [thread:$0]  %s178, 6144, %s180, [#allocation8], 128, 128, 8
        $region24: #{tpu_custom_call.1} parent=11 // pred_fallthru
          _
        // Predicated region
        $region25: #{tpu_custom_call.1} parent=11 // pred_check
          %p186 = pneg %p112
        $region26: #{tpu_custom_call.1} parent=11 // pred_check_branch
          %188 = sbr.rel (%p186) target = $region28
        $region27: #{tpu_custom_call.1} parent=11 // pred_region
          _
        $region28: #{tpu_custom_call.1} parent=11 // pred_fallthru
          _
      $region12: #{tpu_custom_call.1} parent=5 // pred_fallthru
        _
      %p189 = scmp.lt.s32.totalorder %s16, 4
      // Predicated region
      $region29: #{tpu_custom_call.1} parent=5 // pred_check
        %p190 = pneg %p189
      $region30: #{tpu_custom_call.1} parent=5 // pred_check_branch
        %192 = sbr.rel (%p190) target = $region32
      $region31: #{tpu_custom_call.1} parent=5 // pred_region
        _
      $region32: #{tpu_custom_call.1} parent=5 // pred_fallthru
        _
      %p193 = scmp.le.s32.totalorder 1, %s16
      %p194 = scmp.lt.s32.totalorder %s16, 5
      %p195 = pnand %p193, %p194
      %p196 = pneg %p195
      // Predicated region
      $region33: #{tpu_custom_call.1} parent=5 // pred_check
        _
      $region34: #{tpu_custom_call.1} parent=5 // pred_check_branch
        %198 = sbr.rel (%p195) target = $region36
      $region35: #{tpu_custom_call.1} parent=5 // pred_region
        %s199 = ssub.s32 %s16, 1
        // Predicated region
        $region37: #{tpu_custom_call.1} parent=35 // pred_check
          %p200 = pneg %p49
        $region38: #{tpu_custom_call.1} parent=35 // pred_check_branch
          %202 = sbr.rel (%p200) target = $region40
        $region39: #{tpu_custom_call.1} parent=35 // pred_region
          %204 = dma.done [#allocation5], 6144
        $region40: #{tpu_custom_call.1} parent=35 // pred_fallthru
          _
        // Predicated region
        $region41: #{tpu_custom_call.1} parent=35 // pred_check
          %p205 = pneg %p91
        $region42: #{tpu_custom_call.1} parent=35 // pred_check_branch
          %207 = sbr.rel (%p205) target = $region44
        $region43: #{tpu_custom_call.1} parent=35 // pred_region
          %209 = dma.done [#allocation8], 6144
        $region44: #{tpu_custom_call.1} parent=35 // pred_fallthru
          _
        %p210 = pneg %p49
        %p211 = pneg %p46
        %p212 = pneg %p70
        %p213 = pneg %p67
        %p214 = pneg %p91
        %p215 = pneg %p88
        %p216 = pneg %p112
        %p217 = pneg %p109
        %p218 = pneg %p140
        %p219 = pneg %p137
        %s220 = sand.u32 %s127, 1
        %s221 = scalar_lea.sflag [#allocation6], %s220
        %s222 = sand.u32 %s127, 1
        %s223 = smul.addr %s222, 8
        %s224 = scalar_lea.vmem [#allocation9], %s223
        %p225 = scmp.lt.s32.totalorder %s26, 0
        %s226 = ssub.s32 0, %s26
        %s227 = scalar_select %p225, %s226, %s26
        %s228 = sand.u32 %s227, 1
        %s229 = ssub.s32 0, %s228
        %s230 = scalar_select %p225, %s229, %s228
        %p231 = scmp.eq.s32.totalorder %s26, 0
        // Predicated region
        $region45: #{tpu_custom_call.1} parent=35 // pred_check
          %p232 = pneg %p231
        $region46: #{tpu_custom_call.1} parent=35 // pred_check_branch
          %234 = sbr.rel (%p232) target = $region48
        $region47: #{tpu_custom_call.1} parent=35 // pred_region
          %s235 = smul.u32 %s26, 8
          %s236 = smul.u32 %s25, 24
          %s237 = sadd.s32 %s235, %s236
          %s238 = scalar_lea.hbm %s0, %s237
          %s239 = smul.u32 %s230, 16
          %s240 = scalar_lea.vmem [#allocation2], %s239
          %s241 = scalar_lea.sflag [#allocation3], %s230
          // Predicated region
          $region49: #{tpu_custom_call.1} parent=47 // pred_check
            _
          $region50: #{tpu_custom_call.1} parent=47 // pred_check_branch
            %243 = sbr.rel target = $region52
          $region51: #{tpu_custom_call.1} parent=47 // pred_region
            %244 = sst [smem:[#allocation12]] [#allocation11]
            %245 = sst [smem:[#allocation13]] [#allocation10]
          $region52: #{tpu_custom_call.1} parent=47 // pred_fallthru
            _
          %247 = shalt.err (0)
          %s249 = sshll.u32 %s238, 4
          %s250 = int_to_ptr.hbm [resolvable:$true] %s249
          %s251 = sshll.u32 %s240, 4
          %s252 = int_to_ptr.vmem [resolvable:$true] %s251
          %254 = dma.hbm_to_vmem [thread:$0]  %s250, 256, %s252, %s241
        $region48: #{tpu_custom_call.1} parent=35 // pred_fallthru
          _
        %s255 = sadd.s32 %s26, 1
        %p256 = scmp.lt.s32.totalorder %s255, 2
        // Predicated region
        $region53: #{tpu_custom_call.1} parent=35 // pred_check
          %p257 = pneg %p256
        $region54: #{tpu_custom_call.1} parent=35 // pred_check_branch
          %259 = sbr.rel (%p257) target = $region56
        $region55: #{tpu_custom_call.1} parent=35 // pred_region
          %s260 = ssub.s32 1, %s230
          %s261 = smul.u32 %s255, 8
          %s262 = smul.u32 %s25, 24
          %s263 = sadd.s32 %s261, %s262
          %s264 = scalar_lea.hbm %s0, %s263
          %s265 = smul.u32 %s260, 16
          %s266 = scalar_lea.vmem [#allocation2], %s265
          %s267 = scalar_lea.sflag [#allocation3], %s260
          // Predicated region
          $region57: #{tpu_custom_call.1} parent=55 // pred_check
            _
          $region58: #{tpu_custom_call.1} parent=55 // pred_check_branch
            %269 = sbr.rel target = $region60
          $region59: #{tpu_custom_call.1} parent=55 // pred_region
            %270 = sst [smem:[#allocation12]] [#allocation15]
            %271 = sst [smem:[#allocation13]] [#allocation14]
          $region60: #{tpu_custom_call.1} parent=55 // pred_fallthru
            _
          %273 = shalt.err (0)
          %s275 = sshll.u32 %s264, 4
          %s276 = int_to_ptr.hbm [resolvable:$true] %s275
          %s277 = sshll.u32 %s266, 4
          %s278 = int_to_ptr.vmem [resolvable:$true] %s277
          %280 = dma.hbm_to_vmem [thread:$0]  %s276, 256, %s278, %s267
        $region56: #{tpu_custom_call.1} parent=35 // pred_fallthru
          _
        %s281 = smul.u32 %s26, 8
        %s282 = smul.u32 %s230, 16
        %s283 = scalar_lea.vmem [#allocation2], %s282
        %s284 = scalar_lea.sflag [#allocation3], %s230
        %s285 = smul.u32 16, 1
        %s286 = sshll.u32 %s285, 4
        %287 = dma.done %s284, %s286
        %v288 = vld [vmem:[%s283] sm:$0xff]
        %v289 = vld [vmem:[%s283 + $0x8] sm:$0xff]
        %vm290 = vcmp.ge.f32.partialorder %v288, 0.0
        %vm291 = vcmp.ge.f32.partialorder %v289, 0.0
        %v292 = vmul.f32 %v288, 0.1
        %v293 = vmul.f32 %v289, 0.1
        %v294 = vsel %vm290, %v288, %v292
        %v295 = vsel %vm291, %v289, %v293
        %v296 = vld [vmem:[#allocation4] sm:$0xff]
        %v297 = vld [vmem:[#allocation4 + $0x8] sm:$0xff]
        %v298 = vld [vmem:[#allocation4 + $0x10] sm:$0xff]
        %v299 = vld [vmem:[#allocation4 + $0x18] sm:$0xff]
        %v300 = vld [vmem:[#allocation4 + $0x20] sm:$0xff]
        %v301 = vld [vmem:[#allocation4 + $0x28] sm:$0xff]
        %v302 = vld [vmem:[#allocation4 + $0x30] sm:$0xff]
        %v303 = vld [vmem:[#allocation4 + $0x38] sm:$0xff]
        %v304 = vld [vmem:[#allocation4 + $0x40] sm:$0xff]
        %v305 = vld [vmem:[#allocation4 + $0x48] sm:$0xff]
        %v306 = vld [vmem:[#allocation4 + $0x50] sm:$0xff]
        %v307 = vld [vmem:[#allocation4 + $0x58] sm:$0xff]
        %v308 = vld [vmem:[#allocation4 + $0x60] sm:$0xff]
        %v309 = vld [vmem:[#allocation4 + $0x68] sm:$0xff]
        %v310 = vld [vmem:[#allocation4 + $0x70] sm:$0xff]
        %v311 = vld [vmem:[#allocation4 + $0x78] sm:$0xff]
        %v312 = vrot.slane %v294, 1
        %v313 = vrot.slane %v295, 1
        %v314 = vlaneseq
        %v315 = vshrl.u32 %v314, 7
        %vm316 = vcmp.lt.s32.totalorder %v315, 7
        %v317 = vsel %vm316, %v312, %v313
        %v318 = vsel %vm316, %v313, %v312
        %s319 = scalar_lea.vmem [#allocation4], 128
        %v320 = vld [vmem:[%s319] sm:$0xff]
        %v321 = vld [vmem:[%s319 + $0x8] sm:$0xff]
        %v322 = vld [vmem:[%s319 + $0x10] sm:$0xff]
        %v323 = vld [vmem:[%s319 + $0x18] sm:$0xff]
        %v324 = vld [vmem:[%s319 + $0x20] sm:$0xff]
        %v325 = vld [vmem:[%s319 + $0x28] sm:$0xff]
        %v326 = vld [vmem:[%s319 + $0x30] sm:$0xff]
        %v327 = vld [vmem:[%s319 + $0x38] sm:$0xff]
        %v328 = vld [vmem:[%s319 + $0x40] sm:$0xff]
        %v329 = vld [vmem:[%s319 + $0x48] sm:$0xff]
        %v330 = vld [vmem:[%s319 + $0x50] sm:$0xff]
        %v331 = vld [vmem:[%s319 + $0x58] sm:$0xff]
        %v332 = vld [vmem:[%s319 + $0x60] sm:$0xff]
        %v333 = vld [vmem:[%s319 + $0x68] sm:$0xff]
        %v334 = vld [vmem:[%s319 + $0x70] sm:$0xff]
        %v335 = vld [vmem:[%s319 + $0x78] sm:$0xff]
        %336 = vmatpush.msra.mxu0 %v335
        %337 = vmatpush.msra.mxu0 %v334
        %338 = vmatpush.msra.mxu0 %v333
        %339 = vmatpush.msra.mxu0 %v332
        %340 = vmatpush.msra.mxu0 %v331
        %341 = vmatpush.msra.mxu0 %v330
        %342 = vmatpush.msra.mxu0 %v329
        %343 = vmatpush.msra.mxu0 %v328
        %344 = vmatpush.msra.mxu0 %v327
        %345 = vmatpush.msra.mxu0 %v326
        %346 = vmatpush.msra.mxu0 %v325
        %347 = vmatpush.msra.mxu0 %v324
        %348 = vmatpush.msra.mxu0 %v323
        %349 = vmatpush.msra.mxu0 %v322
        %350 = vmatpush.msra.mxu0 %v321
        %351 = vmatpush.msra.mxu0 %v320
        %352 = vmatmul.f32.gmra.mxu0 %v317
        %v353 = vpop.f32.mrf.mxu0
        %v354 = vadd.f32 0.0, %v353
        %355 = vmatmul.f32.gmra.mxu0 %v318
        %v356 = vpop.f32.mrf.mxu0
        %v357 = vadd.f32 0.0, %v356
        %358 = vdwg.mxu0
        %359 = vmatpush.msra.mxu0 %v311
        %360 = vmatpush.msra.mxu0 %v310
        %361 = vmatpush.msra.mxu0 %v309
        %362 = vmatpush.msra.mxu0 %v308
        %363 = vmatpush.msra.mxu0 %v307
        %364 = vmatpush.msra.mxu0 %v306
        %365 = vmatpush.msra.mxu0 %v305
        %366 = vmatpush.msra.mxu0 %v304
        %367 = vmatpush.msra.mxu0 %v303
        %368 = vmatpush.msra.mxu0 %v302
        %369 = vmatpush.msra.mxu0 %v301
        %370 = vmatpush.msra.mxu0 %v300
        %371 = vmatpush.msra.mxu0 %v299
        %372 = vmatpush.msra.mxu0 %v298
        %373 = vmatpush.msra.mxu0 %v297
        %374 = vmatpush.msra.mxu0 %v296
        %375 = vmatmul.f32.gmra.mxu0 %v294
        %v376 = vpop.f32.mrf.mxu0
        %v377 = vadd.f32 %v354, %v376
        %378 = vmatmul.f32.gmra.mxu0 %v295
        %v379 = vpop.f32.mrf.mxu0
        %v380 = vadd.f32 %v357, %v379
        %381 = vdwg.mxu0
        %v382 = vrot.slane %v294, 2
        %v383 = vrot.slane %v295, 2
        %vm384 = vcmp.lt.s32.totalorder %v315, 6
        %v385 = vsel %vm384, %v382, %v383
        %v386 = vsel %vm384, %v383, %v382
        %s387 = scalar_lea.vmem [#allocation4], 256
        %v388 = vld [vmem:[%s387] sm:$0xff]
        %v389 = vld [vmem:[%s387 + $0x8] sm:$0xff]
        %v390 = vld [vmem:[%s387 + $0x10] sm:$0xff]
        %v391 = vld [vmem:[%s387 + $0x18] sm:$0xff]
        %v392 = vld [vmem:[%s387 + $0x20] sm:$0xff]
        %v393 = vld [vmem:[%s387 + $0x28] sm:$0xff]
        %v394 = vld [vmem:[%s387 + $0x30] sm:$0xff]
        %v395 = vld [vmem:[%s387 + $0x38] sm:$0xff]
        %v396 = vld [vmem:[%s387 + $0x40] sm:$0xff]
        %v397 = vld [vmem:[%s387 + $0x48] sm:$0xff]
        %v398 = vld [vmem:[%s387 + $0x50] sm:$0xff]
        %v399 = vld [vmem:[%s387 + $0x58] sm:$0xff]
        %v400 = vld [vmem:[%s387 + $0x60] sm:$0xff]
        %v401 = vld [vmem:[%s387 + $0x68] sm:$0xff]
        %v402 = vld [vmem:[%s387 + $0x70] sm:$0xff]
        %v403 = vld [vmem:[%s387 + $0x78] sm:$0xff]
        %404 = vmatpush.msra.mxu0 %v403
        %405 = vmatpush.msra.mxu0 %v402
        %406 = vmatpush.msra.mxu0 %v401
        %407 = vmatpush.msra.mxu0 %v400
        %408 = vmatpush.msra.mxu0 %v399
        %409 = vmatpush.msra.mxu0 %v398
        %410 = vmatpush.msra.mxu0 %v397
        %411 = vmatpush.msra.mxu0 %v396
        %412 = vmatpush.msra.mxu0 %v395
        %413 = vmatpush.msra.mxu0 %v394
        %414 = vmatpush.msra.mxu0 %v393
        %415 = vmatpush.msra.mxu0 %v392
        %416 = vmatpush.msra.mxu0 %v391
        %417 = vmatpush.msra.mxu0 %v390
        %418 = vmatpush.msra.mxu0 %v389
        %419 = vmatpush.msra.mxu0 %v388
        %420 = vmatmul.f32.gmra.mxu0 %v385
        %v421 = vpop.f32.mrf.mxu0
        %v422 = vadd.f32 0.0, %v421
        %423 = vmatmul.f32.gmra.mxu0 %v386
        %v424 = vpop.f32.mrf.mxu0
        %v425 = vadd.f32 0.0, %v424
        %426 = vdwg.mxu0
        %v427 = vadd.f32 %v377, %v422
        %v428 = vadd.f32 %v380, %v425
        %v429 = vrot.slane %v288, 1
        %v430 = vrot.slane %v289, 1
        %v431 = vsel %vm316, %v429, %v430
        %v432 = vsel %vm316, %v430, %v429
        %v433 = vadd.f32 %v431, %v427
        %v434 = vadd.f32 %v432, %v428
        %v435 = vld [vmem:[%s2] sm:$0x1]
        %v437 = vperm.slane %v435, 0
        %v439 = vadd.f32 %v433, %v437
        %v440 = vadd.f32 %v434, %v437
        %s441 = ssub.s32 %s281, 3
        %v442 = vadd.s32 %v315, 8
        %v443 = vstv %s441
        %v444 = vadd.s32 %v443, %v315
        %v445 = vadd.s32 %v443, %v442
        %vm446 = vcmp.ge.s32.totalorder %v444, 0
        %vm447 = vcmp.ge.s32.totalorder %v445, 0
        %vm448 = vcmp.lt.s32.totalorder %v444, 16
        %vm449 = vcmp.lt.s32.totalorder %v445, 16
        %vm450 = vmand %vm446, %vm448
        %vm451 = vmand %vm447, %vm449
        %vm452 = vcmp.ge.f32.partialorder %v439, 0.0
        %vm453 = vcmp.ge.f32.partialorder %v440, 0.0
        %v454 = vmul.f32 %v439, 0.1
        %v455 = vmul.f32 %v440, 0.1
        %v456 = vsel %vm452, %v439, %v454
        %v457 = vsel %vm453, %v440, %v455
        %v458 = vsel %vm450, 1, 0
        %v459 = vsel %vm451, 1, 0
        %vm460 = vcmp.eq.s32.totalorder %v458, 1
        %vm461 = vcmp.eq.s32.totalorder %v459, 1
        %v462 = vsel %vm460, %v456, 0.0
        %v463 = vsel %vm461, %v457, 0.0
        %v464 = vld [vmem:[#allocation7] sm:$0xff]
        %v465 = vld [vmem:[#allocation7 + $0x8] sm:$0xff]
        %v466 = vld [vmem:[#allocation7 + $0x10] sm:$0xff]
        %v467 = vld [vmem:[#allocation7 + $0x18] sm:$0xff]
        %v468 = vld [vmem:[#allocation7 + $0x20] sm:$0xff]
        %v469 = vld [vmem:[#allocation7 + $0x28] sm:$0xff]
        %v470 = vld [vmem:[#allocation7 + $0x30] sm:$0xff]
        %v471 = vld [vmem:[#allocation7 + $0x38] sm:$0xff]
        %v472 = vld [vmem:[#allocation7 + $0x40] sm:$0xff]
        %v473 = vld [vmem:[#allocation7 + $0x48] sm:$0xff]
        %v474 = vld [vmem:[#allocation7 + $0x50] sm:$0xff]
        %v475 = vld [vmem:[#allocation7 + $0x58] sm:$0xff]
        %v476 = vld [vmem:[#allocation7 + $0x60] sm:$0xff]
        %v477 = vld [vmem:[#allocation7 + $0x68] sm:$0xff]
        %v478 = vld [vmem:[#allocation7 + $0x70] sm:$0xff]
        %v479 = vld [vmem:[#allocation7 + $0x78] sm:$0xff]
        %v480 = vrot.slane %v462, 3
        %v481 = vrot.slane %v463, 3
        %vm482 = vcmp.lt.s32.totalorder %v315, 5
        %v483 = vsel %vm482, %v480, %v481
        %v484 = vsel %vm482, %v481, %v480
        %s485 = scalar_lea.vmem [#allocation7], 128
        %v486 = vld [vmem:[%s485] sm:$0xff]
        %v487 = vld [vmem:[%s485 + $0x8] sm:$0xff]
        %v488 = vld [vmem:[%s485 + $0x10] sm:$0xff]
        %v489 = vld [vmem:[%s485 + $0x18] sm:$0xff]
        %v490 = vld [vmem:[%s485 + $0x20] sm:$0xff]
        %v491 = vld [vmem:[%s485 + $0x28] sm:$0xff]
        %v492 = vld [vmem:[%s485 + $0x30] sm:$0xff]
        %v493 = vld [vmem:[%s485 + $0x38] sm:$0xff]
        %v494 = vld [vmem:[%s485 + $0x40] sm:$0xff]
        %v495 = vld [vmem:[%s485 + $0x48] sm:$0xff]
        %v496 = vld [vmem:[%s485 + $0x50] sm:$0xff]
        %v497 = vld [vmem:[%s485 + $0x58] sm:$0xff]
        %v498 = vld [vmem:[%s485 + $0x60] sm:$0xff]
        %v499 = vld [vmem:[%s485 + $0x68] sm:$0xff]
        %v500 = vld [vmem:[%s485 + $0x70] sm:$0xff]
        %v501 = vld [vmem:[%s485 + $0x78] sm:$0xff]
        %502 = vmatpush.msra.mxu0 %v501
        %503 = vmatpush.msra.mxu0 %v500
        %504 = vmatpush.msra.mxu0 %v499
        %505 = vmatpush.msra.mxu0 %v498
        %506 = vmatpush.msra.mxu0 %v497
        %507 = vmatpush.msra.mxu0 %v496
        %508 = vmatpush.msra.mxu0 %v495
        %509 = vmatpush.msra.mxu0 %v494
        %510 = vmatpush.msra.mxu0 %v493
        %511 = vmatpush.msra.mxu0 %v492
        %512 = vmatpush.msra.mxu0 %v491
        %513 = vmatpush.msra.mxu0 %v490
        %514 = vmatpush.msra.mxu0 %v489
        %515 = vmatpush.msra.mxu0 %v488
        %516 = vmatpush.msra.mxu0 %v487
        %517 = vmatpush.msra.mxu0 %v486
        %518 = vmatmul.f32.gmra.mxu0 %v483
        %v519 = vpop.f32.mrf.mxu0
        %v520 = vadd.f32 0.0, %v519
        %521 = vmatmul.f32.gmra.mxu0 %v484
        %v522 = vpop.f32.mrf.mxu0
        %523 = vdwg.mxu0
        %524 = vmatpush.msra.mxu0 %v479
        %525 = vmatpush.msra.mxu0 %v478
        %526 = vmatpush.msra.mxu0 %v477
        %527 = vmatpush.msra.mxu0 %v476
        %528 = vmatpush.msra.mxu0 %v475
        %529 = vmatpush.msra.mxu0 %v474
        %530 = vmatpush.msra.mxu0 %v473
        %531 = vmatpush.msra.mxu0 %v472
        %532 = vmatpush.msra.mxu0 %v471
        %533 = vmatpush.msra.mxu0 %v470
        %534 = vmatpush.msra.mxu0 %v469
        %535 = vmatpush.msra.mxu0 %v468
        %536 = vmatpush.msra.mxu0 %v467
        %537 = vmatpush.msra.mxu0 %v466
        %538 = vmatpush.msra.mxu0 %v465
        %539 = vmatpush.msra.mxu0 %v464
        %540 = vmatmul.f32.gmra.mxu0 %v462
        %v541 = vpop.f32.mrf.mxu0
        %v542 = vadd.f32 %v520, %v541
        %543 = vmatmul.f32.gmra.mxu0 %v463
        %v544 = vpop.f32.mrf.mxu0
        %545 = vdwg.mxu0
        %v546 = vrot.slane %v462, 6
        %v547 = vrot.slane %v463, 6
        %vm548 = vcmp.lt.s32.totalorder %v315, 2
        %v549 = vsel %vm548, %v546, %v547
        %v550 = vsel %vm548, %v547, %v546
        %s551 = scalar_lea.vmem [#allocation7], 256
        %v552 = vld [vmem:[%s551] sm:$0xff]
        %v553 = vld [vmem:[%s551 + $0x8] sm:$0xff]
        %v554 = vld [vmem:[%s551 + $0x10] sm:$0xff]
        %v555 = vld [vmem:[%s551 + $0x18] sm:$0xff]
        %v556 = vld [vmem:[%s551 + $0x20] sm:$0xff]
        %v557 = vld [vmem:[%s551 + $0x28] sm:$0xff]
        %v558 = vld [vmem:[%s551 + $0x30] sm:$0xff]
        %v559 = vld [vmem:[%s551 + $0x38] sm:$0xff]
        %v560 = vld [vmem:[%s551 + $0x40] sm:$0xff]
        %v561 = vld [vmem:[%s551 + $0x48] sm:$0xff]
        %v562 = vld [vmem:[%s551 + $0x50] sm:$0xff]
        %v563 = vld [vmem:[%s551 + $0x58] sm:$0xff]
        %v564 = vld [vmem:[%s551 + $0x60] sm:$0xff]
        %v565 = vld [vmem:[%s551 + $0x68] sm:$0xff]
        %v566 = vld [vmem:[%s551 + $0x70] sm:$0xff]
        %v567 = vld [vmem:[%s551 + $0x78] sm:$0xff]
        %568 = vmatpush.msra.mxu0 %v567
        %569 = vmatpush.msra.mxu0 %v566
        %570 = vmatpush.msra.mxu0 %v565
        %571 = vmatpush.msra.mxu0 %v564
        %572 = vmatpush.msra.mxu0 %v563
        %573 = vmatpush.msra.mxu0 %v562
        %574 = vmatpush.msra.mxu0 %v561
        %575 = vmatpush.msra.mxu0 %v560
        %576 = vmatpush.msra.mxu0 %v559
        %577 = vmatpush.msra.mxu0 %v558
        %578 = vmatpush.msra.mxu0 %v557
        %579 = vmatpush.msra.mxu0 %v556
        %580 = vmatpush.msra.mxu0 %v555
        %581 = vmatpush.msra.mxu0 %v554
        %582 = vmatpush.msra.mxu0 %v553
        %583 = vmatpush.msra.mxu0 %v552
        %584 = vmatmul.f32.gmra.mxu0 %v549
        %v585 = vpop.f32.mrf.mxu0
        %v586 = vadd.f32 0.0, %v585
        %587 = vmatmul.f32.gmra.mxu0 %v550
        %v588 = vpop.f32.mrf.mxu0
        %589 = vdwg.mxu0
        %v590 = vadd.f32 %v542, %v586
        %v591 = vrot.slane %v439, 3
        %v592 = vrot.slane %v440, 3
        %v593 = vsel %vm482, %v591, %v592
        %v594 = vadd.f32 %v593, %v590
        %v595 = vld [vmem:[%s4] sm:$0x1]
        %v597 = vperm.slane %v595, 0
        %v599 = vadd.f32 %v594, %v597
        %600 = vst [vmem:[%s224] sm:$0xff] %v599
        %s601 = sand.u32 %s127, 1
        %s602 = scalar_lea.sflag [#allocation6], %s601
        %s603 = sand.u32 %s127, 1
        %s604 = smul.addr %s603, 8
        %s605 = scalar_lea.vmem [#allocation9], %s604
        // Predicated region
        $region61: #{tpu_custom_call.1} parent=35 // pred_check
          %p606 = pneg %p137
        $region62: #{tpu_custom_call.1} parent=35 // pred_check_branch
          %608 = sbr.rel (%p606) target = $region64
        $region63: #{tpu_custom_call.1} parent=35 // pred_region
          %610 = vsyncadd %s602, 0
          %s611 = smul.addr %s25, 2
          %s612 = sadd.s32 %s26, %s611
          %s613 = smul.addr %s612, 8
          %s614 = scalar_lea.hbm %s5, %s613
          %s616 = sshll.u32 %s605, 4
          %s617 = int_to_ptr.vmem [resolvable:$true] %s616
          %s618 = sshll.u32 %s614, 4
          %s619 = int_to_ptr.hbm [resolvable:$true] %s618
          %621 = dma.vmem_to_hbm [thread:$0]  %s617, 128, %s619, %s602
        $region64: #{tpu_custom_call.1} parent=35 // pred_fallthru
          _
      $region36: #{tpu_custom_call.1} parent=5 // pred_fallthru
        _
      %p622 = scmp.le.s32.totalorder 2, %s16
      // Predicated region
      $region65: #{tpu_custom_call.1} parent=5 // pred_check
        %p623 = pneg %p622
      $region66: #{tpu_custom_call.1} parent=5 // pred_check_branch
        %625 = sbr.rel (%p623) target = $region68
      $region67: #{tpu_custom_call.1} parent=5 // pred_region
        %s626 = ssub.s32 %s16, 2
        // Predicated region
        $region69: #{tpu_custom_call.1} parent=67 // pred_check
          %p627 = pneg %p143
        $region70: #{tpu_custom_call.1} parent=67 // pred_check_branch
          %629 = sbr.rel (%p627) target = $region72
        $region71: #{tpu_custom_call.1} parent=67 // pred_region
          %s630 = sand.u32 %s128, 1
          %s631 = scalar_lea.sflag [#allocation6], %s630
          %s632 = sand.u32 %s128, 1
          %s633 = smul.addr %s632, 8
          %s634 = scalar_lea.vmem [#allocation9], %s633
          %636 = dma.done %s631, 128
        $region72: #{tpu_custom_call.1} parent=67 // pred_fallthru
          _
      $region68: #{tpu_custom_call.1} parent=5 // pred_fallthru
        _
    $region6: #{tpu_custom_call.1} parent=1 // loop_footer
      %s20 = sadd.s32 1, %s16
    $region7: #{tpu_custom_call.1} parent=1 // loop_footer_branch
      %15 = sbr.rel target = $region3
    $region8: #{tpu_custom_call.1} parent=1 // loop_exit
      _
    %637 = vsyncpa [#allocation5], 1
    %s638 = scalar_lea.sflag [#allocation5], 1
    %639 = vsyncpa %s638, 1
    %640 = vsyncpa [#allocation8], 1
    %641 = vsyncpa [#allocation6], 1
    %s642 = scalar_lea.sflag [#allocation6], 1
    %643 = vsyncpa %s642, 1
  %644 = vsyncmov [#allocation3]
  %s645 = vpop.sfrf %644
  %p646 = scmp.eq.s32.totalorder %s645, 0
  %p647 = pneg %p646
  %649 = shalt.err (%p647)
  %s650 = scalar_lea.sflag [#allocation3], 1
  %651 = vsyncmov %s650
  %s652 = vpop.sfrf %651
  %p653 = scmp.eq.s32.totalorder %s652, 0
  %p654 = pneg %p653
  %656 = shalt.err (%p654)

</llo_original>
